<compile_context>
chip_gen: v7x
topology: tpu7x:2x2x1
jax: 0.10.0
libtpu: 0.0.40
codegen_flags: <defaults>
</compile_context>

<pallas_src>
import functools

import jax
import jax.numpy as jnp
import numpy as np
from jax import lax
from jax.experimental import pallas as pl
from jax.experimental.pallas import tpu as pltpu

EPS = 1e-5
NEG_SLOPE = 0.2
LANE = 128
VMEM_BUDGET = 24 * 1024 * 1024   # v7x-safe working-set budget (64 MiB VMEM / TC)
VMEM_LIMIT = 28 * 1024 * 1024


def _round_up(v, m):
    return (v + m - 1) // m * m


def _convblock_kernel(x_ref, w_ref, mask_ref, params_ref, o_ref,
                      s1_ref, s2_ref, scale_ref, bias_ref,
                      *, shifts, tile_m, ext, m_valid, cout_pad):
    # grid = (sweep p, sample n, M-tile t); all axes sequential ("arbitrary").
    p = pl.program_id(0)   # 0: accumulate BN stats, 1: finalize + normalize + act
    n = pl.program_id(1)
    t = pl.program_id(2)
    first = jnp.logical_and(n == 0, t == 0)

    @pl.when(jnp.logical_and(p == 0, first))
    def _init():
        s1_ref[...] = jnp.zeros_like(s1_ref)
        s2_ref[...] = jnp.zeros_like(s2_ref)

    # ---- stride-2 conv on this tile from the 1x-data phase layout ----
    # x_ref[0] rows are (pi, pj, cin) phases; a kernel offset (i, j) is just the
    # phase (i%2, j%2) shifted by s = (i//2)*Wp2 + (j//2) along the flat lane axis.
    base = pl.multiple_of(t * tile_m, LANE)
    x_ext = x_ref[0, :, pl.ds(base, tile_m + ext)]            # [4*Cin, tile_m + ext]
    y = jnp.zeros((cout_pad, tile_m), jnp.float32)
    for k, s in enumerate(shifts):                            # static unroll
        xk = x_ext[:, s:s + tile_m]                           # static shifted slab
        y = y + jnp.dot(w_ref[k], xk, preferred_element_type=jnp.float32)

    @pl.when(p == 0)
    def _accumulate_stats():
        ym = y * mask_ref[...]                                # zero padded/junk lanes
        s1_ref[...] += jnp.sum(ym, axis=1, keepdims=True)
        s2_ref[...] += jnp.sum(ym * ym, axis=1, keepdims=True)

    @pl.when(jnp.logical_and(p == 1, first))
    def _finalize_stats():
        inv_m = 1.0 / m_valid
        mean = s1_ref[...] * inv_m
        var = s2_ref[...] * inv_m - mean * mean               # biased (training-mode) var
        gamma = params_ref[:, 0:1]
        beta = params_ref[:, 1:2]
        scale = gamma * lax.rsqrt(var + EPS)                  # rsqrt -> EUP slot
        scale_ref[...] = scale
        bias_ref[...] = beta - mean * scale

    @pl.when(p == 1)
    def _apply_and_write():
        z = y * scale_ref[...] + bias_ref[...]
        o_ref[...] = jnp.maximum(z, NEG_SLOPE * z).astype(o_ref.dtype)


def conv_block(x, weight, gamma, beta, *, compute_dtype=jnp.bfloat16):
    """ConvBlock forward.  x: [N, Cin, H, W] NCHW, weight: [Cout, Cin, kh, kw] OIHW.
    Conv2d(stride=2, padding=ks//2-1, bias=False) + BatchNorm2d (batch stats) +
    LeakyReLU(0.2)."""
    N, Cin, H, W = x.shape
    Cout, Cin_w, kh, kw = weight.shape
    assert Cin_w == Cin
    assert kh == kw and kh % 2 == 0, "stride-2 ConvBlock kernel expects even kernel_size"
    stride = 2
    pad = kh // 2 - 1
    Ho = (H + 2 * pad - kh) // stride + 1
    Wo = (W + 2 * pad - kw) // stride + 1
    kh2, kw2 = kh // 2, kw // 2

    # Padded (rounded up to even) extents for the stride-2 phase split.
    Hp, Wp = H + 2 * pad, W + 2 * pad
    Hp_e, Wp_e = Hp + (Hp % 2), Wp + (Wp % 2)
    Hp2, Wp2 = Hp_e // 2, Wp_e // 2
    Sp = Hp2 * Wp2                        # per-sample flat positions (row stride Wp2)

    shifts = tuple(di * Wp2 + dj for di in range(kh2) for dj in range(kw2))
    s_max = shifts[-1]
    tile_m = min(1024, _round_up(Sp, LANE))
    n_t = pl.cdiv(Sp, tile_m)
    ext = _round_up(max(s_max, 1), LANE)
    sp_pad = n_t * tile_m + ext
    cout_pad = _round_up(Cout, 8)
    cin4 = 4 * Cin
    m_valid = float(N * Ho * Wo)
    esize = jnp.dtype(compute_dtype).itemsize

    # VMEM working set (inputs are double-buffered by Pallas) — sized for v7x.
    vmem_est = (2 * cin4 * sp_pad * esize            # resident sample phase block x2
                + 2 * len(shifts) * cout_pad * cin4 * esize
                + 2 * tile_m * 4                     # mask tile x2
                + 2 * cout_pad * 2 * 4               # gamma/beta x2
                + 2 * cout_pad * tile_m * 4          # output tile x2
                + 4 * cout_pad * LANE * 4            # BN scratch (lane-padded)
                + 2 * 1024 * 1024)                   # slack for in-kernel live values
    if vmem_est > VMEM_BUDGET:
        # TODO(synk): stream per-tile halo windows with memory_space=pl.ANY + manual
        # double-buffered make_async_copy to lift the resident-sample VMEM bound.
        raise NotImplementedError(
            f"resident-sample ConvBlock kernel needs ~{vmem_est} B VMEM "
            f"(> {VMEM_BUDGET} B budget) for this sample size.")

    # ---- 1x-data glue (XLA, fused under jit): pad + stride-2 space-to-depth ----
    xf = x.astype(compute_dtype)
    xp = jnp.pad(xf, ((0, 0), (0, 0), (pad, Hp_e - H - pad), (pad, Wp_e - W - pad)))
    xs = xp.reshape(N, Cin, Hp2, 2, Wp2, 2).transpose(0, 3, 5, 1, 2, 4)
    x_phases = xs.reshape(N, cin4, Sp)                        # rows = (pi, pj, cin)
    x_phases = jnp.pad(x_phases, ((0, 0), (0, 0), (0, sp_pad - Sp)))

    # Per-shift weight matrices: W_shift[di*kw2+dj, cout, (pi,pj,cin)] = w[cout,cin,2di+pi,2dj+pj]
    wr = weight.reshape(Cout, Cin, kh2, 2, kw2, 2).transpose(2, 4, 0, 3, 5, 1)
    w_shift = wr.reshape(kh2 * kw2, Cout, cin4)
    w_shift = jnp.pad(w_shift, ((0, 0), (0, cout_pad - Cout), (0, 0))).astype(compute_dtype)

    # Validity mask over the per-sample flat axis (junk columns excluded from BN stats).
    f = jnp.arange(n_t * tile_m, dtype=jnp.int32)
    mask = jnp.logical_and(f // Wp2 < Ho, f % Wp2 < Wo).astype(jnp.float32)
    mask = mask.reshape(1, n_t * tile_m)

    gamma_p = jnp.pad(gamma.astype(jnp.float32), (0, cout_pad - Cout))
    beta_p = jnp.pad(beta.astype(jnp.float32), (0, cout_pad - Cout))
    params = jnp.stack([gamma_p, beta_p], axis=1)             # [cout_pad, 2]

    # Honest HBM cost: phase input read once per sweep, weights/mask/params small,
    # output written once.
    m_total = N * n_t * tile_m
    cost = pl.CostEstimate(
        flops=2 * (2 * m_total * len(shifts) * cin4 * cout_pad) + 14 * m_total * cout_pad,
        transcendentals=cout_pad,
        bytes_accessed=(2 * N * cin4 * sp_pad * esize
                        + len(shifts) * cout_pad * cin4 * esize
                        + 2 * N * n_t * tile_m * 4
                        + cout_pad * 2 * 4
                        + cout_pad * m_total * 4),
    )

    kernel = functools.partial(
        _convblock_kernel, shifts=shifts, tile_m=tile_m, ext=ext,
        m_valid=m_valid, cout_pad=cout_pad)

    out_flat = pl.pallas_call(
        kernel,
        out_shape=jax.ShapeDtypeStruct((cout_pad, N * n_t * tile_m), jnp.float32),
        grid=(2, N, n_t),
        in_specs=[
            pl.BlockSpec((1, cin4, sp_pad), lambda p, n, t: (n, 0, 0)),
            pl.BlockSpec((kh2 * kw2, cout_pad, cin4), lambda p, n, t: (0, 0, 0)),
            pl.BlockSpec((1, tile_m), lambda p, n, t: (0, t)),
            pl.BlockSpec((cout_pad, 2), lambda p, n, t: (0, 0)),
        ],
        # sweep 0 parks the output window on block 0 (no extra HBM writeback);
        # sweep 1 walks the real output blocks.
        out_specs=pl.BlockSpec((cout_pad, tile_m),
                               lambda p, n, t: (0, (n * n_t + t) * p)),
        scratch_shapes=[
            pltpu.VMEM((cout_pad, 1), jnp.float32),   # sum
            pltpu.VMEM((cout_pad, 1), jnp.float32),   # sum of squares
            pltpu.VMEM((cout_pad, 1), jnp.float32),   # BN scale
            pltpu.VMEM((cout_pad, 1), jnp.float32),   # BN bias
        ],
        compiler_params=pltpu.CompilerParams(
            # BN stats accumulate across (sweep, sample, tile) -> fully sequential.
            # TODO(synk): on v7x, split M across the two TensorCores with per-core
            # partial (sum, sumsq) combined via VMEM_SHARED before sweep 1.
            dimension_semantics=("arbitrary", "arbitrary", "arbitrary"),
            vmem_limit_bytes=VMEM_LIMIT,
        ),
        cost_estimate=cost,
    )(x_phases, w_shift, mask, params)

    # Channel-major [Cout, ...] end-to-end; NCHW only at the module boundary
    # (drop this transpose when chaining ConvBlocks).
    out = out_flat.reshape(cout_pad, N, n_t * tile_m)[:, :, :Sp]
    out = out.reshape(cout_pad, N, Hp2, Wp2)[:Cout, :, :Ho, :Wo]
    return out.transpose(1, 0, 2, 3).astype(x.dtype)


def reference(x, weight, gamma, beta):
    """Pure-JAX reference mirroring the PyTorch forward (training-mode BN)."""
    ks = weight.shape[-1]
    stride, pad = 2, ks // 2 - 1
    y = lax.conv_general_dilated(
        x, weight, (stride, stride), [(pad, pad), (pad, pad)],
        dimension_numbers=("NCHW", "OIHW", "NCHW"))
    mean = y.mean(axis=(0, 2, 3), keepdims=True)
    var = jnp.square(y - mean).mean(axis=(0, 2, 3), keepdims=True)
    y = (y - mean) / jnp.sqrt(var + EPS)
    y = y * gamma.reshape(1, -1, 1, 1) + beta.reshape(1, -1, 1, 1)
    return jnp.where(y > 0, y, NEG_SLOPE * y)


if __name__ == "__main__":
    # ConvBlock(in_channels=4, out_channels=8, is_bn=True, act_name='leaky', kernel_size=4)
    N, Cin, H, W = 2, 4, 16, 16
    Cout, ks = 8, 4

    key = jax.random.PRNGKey(0)
    kx, kw = jax.random.split(key)
    x = jax.random.normal(kx, (N, Cin, H, W), dtype=jnp.float32)
    weight = 0.1 * jax.random.normal(kw, (Cout, Cin, ks, ks), dtype=jnp.float32)
    gamma = jnp.ones((Cout,), dtype=jnp.float32)   # BatchNorm2d default init
    beta = jnp.zeros((Cout,), dtype=jnp.float32)

    Ho = (H + 2 * (ks // 2 - 1) - ks) // 2 + 1
    Wo = (W + 2 * (ks // 2 - 1) - ks) // 2 + 1
    ref = reference(x, weight, gamma, beta)

    # f32 matmul operands: tight correctness check.
    fwd_f32 = jax.jit(functools.partial(conv_block, compute_dtype=jnp.float32))
    out_f32 = jax.block_until_ready(fwd_f32(x, weight, gamma, beta))
    assert out_f32.shape == (N, Cout, Ho, Wo)
    np.testing.assert_allclose(np.asarray(out_f32), np.asarray(ref), atol=1e-4, rtol=1e-4)

    # bf16 matmul operands (perf default: halves X DMA bytes / VMEM): looser check.
    fwd_bf16 = jax.jit(functools.partial(conv_block, compute_dtype=jnp.bfloat16))
    out_bf16 = jax.block_until_ready(fwd_bf16(x, weight, gamma, beta))
    assert out_bf16.shape == (N, Cout, Ho, Wo)
    np.testing.assert_allclose(np.asarray(out_bf16), np.asarray(ref), atol=5e-2, rtol=5e-2)

    print("KERNEL_OK")
</pallas_src>

<mosaic_0001>
module attributes {stable_mosaic.version = 11 : i64} {
  func.func @_convblock_kernel(%arg0: i32, %arg1: i32, %arg2: i32, %arg3: memref<1x16x256xf32, #tpu.memory_space<vmem>>, %arg4: memref<4x8x16xf32, #tpu.memory_space<vmem>>, %arg5: memref<1x128xf32, #tpu.memory_space<vmem>>, %arg6: memref<8x2xf32, #tpu.memory_space<vmem>>, %arg7: memref<8x128xf32, #tpu.memory_space<vmem>>, %arg8: memref<8x1xf32, #tpu.memory_space<vmem>>, %arg9: memref<8x1xf32, #tpu.memory_space<vmem>>, %arg10: memref<8x1xf32, #tpu.memory_space<vmem>>, %arg11: memref<8x1xf32, #tpu.memory_space<vmem>>) attributes {dimension_semantics = [#tpu.dimension_semantics<arbitrary>, #tpu.dimension_semantics<arbitrary>, #tpu.dimension_semantics<arbitrary>], iteration_bounds = array<i64: 2, 2, 1>, scalar_prefetch = 0 : i64, scratch_operands = 4 : i64, tpu.core_type = #tpu.core_type<tc>, window_params = [{transform_indices = @transform_0, window_bounds = array<i64: 1, 16, 256>}, {pipeline_mode = #tpu.pipeline_mode<synchronous>, transform_indices = @transform_1, window_bounds = array<i64: 4, 8, 16>}, {transform_indices = @transform_2, window_bounds = array<i64: 1, 128>}, {pipeline_mode = #tpu.pipeline_mode<synchronous>, transform_indices = @transform_3, window_bounds = array<i64: 8, 2>}, {transform_indices = @transform_4, window_bounds = array<i64: 8, 128>}]} {
    %c0_i32 = arith.constant 0 : i32
    %0 = arith.cmpi eq, %arg1, %c0_i32 : i32
    %c0_i32_0 = arith.constant 0 : i32
    %1 = arith.cmpi eq, %arg2, %c0_i32_0 : i32
    %2 = arith.andi %0, %1 : i1
    %c0_i32_1 = arith.constant 0 : i32
    %3 = arith.cmpi eq, %arg0, %c0_i32_1 : i32
    %4 = arith.andi %3, %2 : i1
    %5 = arith.extui %4 : i1 to i32
    %c0_i32_2 = arith.constant 0 : i32
    %6 = arith.cmpi ne, %5, %c0_i32_2 : i32
    scf.if %6 {
      %cst_22 = arith.constant 0.000000e+00 : f32
      %43 = vector.broadcast %cst_22 : f32 to vector<8x1xf32>
      %c0_23 = arith.constant 0 : index
      %c0_24 = arith.constant 0 : index
      %44 = vector.load %arg8[%c0_23, %c0_24] : memref<8x1xf32, #tpu.memory_space<vmem>>, vector<8x1xf32>
      tpu.vector_store %arg8[%c0_23, %c0_24], %43 {strides = array<i32>} : memref<8x1xf32, #tpu.memory_space<vmem>>, vector<8x1xf32>,
      %cst_25 = arith.constant 0.000000e+00 : f32
      %45 = vector.broadcast %cst_25 : f32 to vector<8x1xf32>
      %c0_26 = arith.constant 0 : index
      %c0_27 = arith.constant 0 : index
      %46 = vector.load %arg9[%c0_26, %c0_27] : memref<8x1xf32, #tpu.memory_space<vmem>>, vector<8x1xf32>
      tpu.vector_store %arg9[%c0_26, %c0_27], %45 {strides = array<i32>} : memref<8x1xf32, #tpu.memory_space<vmem>>, vector<8x1xf32>,
    } else {
    }
    %c128_i32 = arith.constant 128 : i32
    %7 = arith.muli %arg2, %c128_i32 : i32
    %8 = tpu.assume_multiple %7, 128 : i32
    %c0 = arith.constant 0 : index
    %c0_3 = arith.constant 0 : index
    %9 = arith.index_cast %8 : i32 to index
    %10 = vector.load %arg3[%c0, %c0_3, %9] : memref<1x16x256xf32, #tpu.memory_space<vmem>>, vector<1x16x256xf32>
    %11 = vector.shape_cast %10 : vector<1x16x256xf32> to vector<16x256xf32>
    %cst = arith.constant 0.000000e+00 : f32
    %12 = vector.broadcast %cst : f32 to vector<8x128xf32>
    %13 = vector.extract_strided_slice %11 {offsets = [0, 0], sizes = [16, 128], strides = [1, 1]} : vector<16x256xf32> to vector<16x128xf32>
    %c0_4 = arith.constant 0 : index
    %c0_5 = arith.constant 0 : index
    %c0_6 = arith.constant 0 : index
    %14 = vector.load %arg4[%c0_4, %c0_5, %c0_6] : memref<4x8x16xf32, #tpu.memory_space<vmem>>, vector<1x8x16xf32>
    %15 = vector.shape_cast %14 : vector<1x8x16xf32> to vector<8x16xf32>
    %cst_7 = arith.constant dense<0.000000e+00> : vector<8x128xf32>
    %16 = tpu.matmul %15, %13, %cst_7 {dimension_numbers = #tpu.dot_dimension_numbers<[1], [0], [0], [1], [0, 0, 1, 1], [], []>} : vector<8x16xf32>, vector<16x128xf32>, vector<8x128xf32> -> vector<8x128xf32>
    %17 = arith.addf %12, %16 : vector<8x128xf32>
    %18 = vector.extract_strided_slice %11 {offsets = [0, 1], sizes = [16, 128], strides = [1, 1]} : vector<16x256xf32> to vector<16x128xf32>
    %c1 = arith.constant 1 : index
    %c0_8 = arith.constant 0 : index
    %c0_9 = arith.constant 0 : index
    %19 = vector.load %arg4[%c1, %c0_8, %c0_9] : memref<4x8x16xf32, #tpu.memory_space<vmem>>, vector<1x8x16xf32>
    %20 = vector.shape_cast %19 : vector<1x8x16xf32> to vector<8x16xf32>
    %cst_10 = arith.constant dense<0.000000e+00> : vector<8x128xf32>
    %21 = tpu.matmul %20, %18, %cst_10 {dimension_numbers = #tpu.dot_dimension_numbers<[1], [0], [0], [1], [0, 0, 1, 1], [], []>} : vector<8x16xf32>, vector<16x128xf32>, vector<8x128xf32> -> vector<8x128xf32>
    %22 = arith.addf %17, %21 : vector<8x128xf32>
    %23 = vector.extract_strided_slice %11 {offsets = [0, 9], sizes = [16, 128], strides = [1, 1]} : vector<16x256xf32> to vector<16x128xf32>
    %c2 = arith.constant 2 : index
    %c0_11 = arith.constant 0 : index
    %c0_12 = arith.constant 0 : index
    %24 = vector.load %arg4[%c2, %c0_11, %c0_12] : memref<4x8x16xf32, #tpu.memory_space<vmem>>, vector<1x8x16xf32>
    %25 = vector.shape_cast %24 : vector<1x8x16xf32> to vector<8x16xf32>
    %cst_13 = arith.constant dense<0.000000e+00> : vector<8x128xf32>
    %26 = tpu.matmul %25, %23, %cst_13 {dimension_numbers = #tpu.dot_dimension_numbers<[1], [0], [0], [1], [0, 0, 1, 1], [], []>} : vector<8x16xf32>, vector<16x128xf32>, vector<8x128xf32> -> vector<8x128xf32>
    %27 = arith.addf %22, %26 : vector<8x128xf32>
    %28 = vector.extract_strided_slice %11 {offsets = [0, 10], sizes = [16, 128], strides = [1, 1]} : vector<16x256xf32> to vector<16x128xf32>
    %c3 = arith.constant 3 : index
    %c0_14 = arith.constant 0 : index
    %c0_15 = arith.constant 0 : index
    %29 = vector.load %arg4[%c3, %c0_14, %c0_15] : memref<4x8x16xf32, #tpu.memory_space<vmem>>, vector<1x8x16xf32>
    %30 = vector.shape_cast %29 : vector<1x8x16xf32> to vector<8x16xf32>
    %cst_16 = arith.constant dense<0.000000e+00> : vector<8x128xf32>
    %31 = tpu.matmul %30, %28, %cst_16 {dimension_numbers = #tpu.dot_dimension_numbers<[1], [0], [0], [1], [0, 0, 1, 1], [], []>} : vector<8x16xf32>, vector<16x128xf32>, vector<8x128xf32> -> vector<8x128xf32>
    %32 = arith.addf %27, %31 : vector<8x128xf32>
    %c0_i32_17 = arith.constant 0 : i32
    %33 = arith.cmpi eq, %arg0, %c0_i32_17 : i32
    %34 = arith.extui %33 : i1 to i32
    %c0_i32_18 = arith.constant 0 : i32
    %35 = arith.cmpi ne, %34, %c0_i32_18 : i32
    scf.if %35 {
      %c0_22 = arith.constant 0 : index
      %c0_23 = arith.constant 0 : index
      %43 = vector.load %arg5[%c0_22, %c0_23] : memref<1x128xf32, #tpu.memory_space<vmem>>, vector<1x128xf32>
      %44 = vector.broadcast %43 : vector<1x128xf32> to vector<8x128xf32>
      %45 = arith.mulf %32, %44 : vector<8x128xf32>
      %c0_24 = arith.constant 0 : index
      %c0_25 = arith.constant 0 : index
      %46 = vector.load %arg8[%c0_24, %c0_25] : memref<8x1xf32, #tpu.memory_space<vmem>>, vector<8x1xf32>
      %cst_26 = arith.constant dense<0.000000e+00> : vector<8xf32>
      %47 = vector.multi_reduction <add>, %45, %cst_26 [1] : vector<8x128xf32> to vector<8xf32>
      %48 = vector.shape_cast %47 : vector<8xf32> to vector<8x1xf32>
      %49 = arith.addf %46, %48 : vector<8x1xf32>
      %c0_27 = arith.constant 0 : index
      %c0_28 = arith.constant 0 : index
      %50 = vector.load %arg8[%c0_27, %c0_28] : memref<8x1xf32, #tpu.memory_space<vmem>>, vector<8x1xf32>
      tpu.vector_store %arg8[%c0_27, %c0_28], %49 {strides = array<i32>} : memref<8x1xf32, #tpu.memory_space<vmem>>, vector<8x1xf32>,
      %c0_29 = arith.constant 0 : index
      %c0_30 = arith.constant 0 : index
      %51 = vector.load %arg9[%c0_29, %c0_30] : memref<8x1xf32, #tpu.memory_space<vmem>>, vector<8x1xf32>
      %52 = arith.mulf %45, %45 : vector<8x128xf32>
      %cst_31 = arith.constant dense<0.000000e+00> : vector<8xf32>
      %53 = vector.multi_reduction <add>, %52, %cst_31 [1] : vector<8x128xf32> to vector<8xf32>
      %54 = vector.shape_cast %53 : vector<8xf32> to vector<8x1xf32>
      %55 = arith.addf %51, %54 : vector<8x1xf32>
      %c0_32 = arith.constant 0 : index
      %c0_33 = arith.constant 0 : index
      %56 = vector.load %arg9[%c0_32, %c0_33] : memref<8x1xf32, #tpu.memory_space<vmem>>, vector<8x1xf32>
      tpu.vector_store %arg9[%c0_32, %c0_33], %55 {strides = array<i32>} : memref<8x1xf32, #tpu.memory_space<vmem>>, vector<8x1xf32>,
    } else {
    }
    %c1_i32 = arith.constant 1 : i32
    %36 = arith.cmpi eq, %arg0, %c1_i32 : i32
    %37 = arith.andi %36, %2 : i1
    %38 = arith.extui %37 : i1 to i32
    %c0_i32_19 = arith.constant 0 : i32
    %39 = arith.cmpi ne, %38, %c0_i32_19 : i32
    scf.if %39 {
      %c0_22 = arith.constant 0 : index
      %c0_23 = arith.constant 0 : index
      %43 = vector.load %arg8[%c0_22, %c0_23] : memref<8x1xf32, #tpu.memory_space<vmem>>, vector<8x1xf32>
      %cst_24 = arith.constant 7.812500e-03 : f32
      %44 = vector.broadcast %cst_24 : f32 to vector<8x1xf32>
      %45 = arith.mulf %43, %44 : vector<8x1xf32>
      %c0_25 = arith.constant 0 : index
      %c0_26 = arith.constant 0 : index
      %46 = vector.load %arg9[%c0_25, %c0_26] : memref<8x1xf32, #tpu.memory_space<vmem>>, vector<8x1xf32>
      %cst_27 = arith.constant 7.812500e-03 : f32
      %47 = vector.broadcast %cst_27 : f32 to vector<8x1xf32>
      %48 = arith.mulf %46, %47 : vector<8x1xf32>
      %49 = arith.mulf %45, %45 : vector<8x1xf32>
      %50 = arith.subf %48, %49 : vector<8x1xf32>
      %c0_28 = arith.constant 0 : index
      %c0_29 = arith.constant 0 : index
      %51 = vector.load %arg6[%c0_28, %c0_29] : memref<8x2xf32, #tpu.memory_space<vmem>>, vector<8x1xf32>
      %c0_30 = arith.constant 0 : index
      %c1_31 = arith.constant 1 : index
      %52 = vector.load %arg6[%c0_30, %c1_31] : memref<8x2xf32, #tpu.memory_space<vmem>>, vector<8x1xf32>
      %cst_32 = arith.constant 9.99999974E-6 : f32
      %53 = vector.broadcast %cst_32 : f32 to vector<8x1xf32>
      %54 = arith.addf %50, %53 : vector<8x1xf32>
      %55 = math.rsqrt %54 : vector<8x1xf32>
      %56 = arith.mulf %51, %55 : vector<8x1xf32>
      %c0_33 = arith.constant 0 : index
      %c0_34 = arith.constant 0 : index
      %57 = vector.load %arg10[%c0_33, %c0_34] : memref<8x1xf32, #tpu.memory_space<vmem>>, vector<8x1xf32>
      tpu.vector_store %arg10[%c0_33, %c0_34], %56 {strides = array<i32>} : memref<8x1xf32, #tpu.memory_space<vmem>>, vector<8x1xf32>,
      %58 = arith.mulf %45, %56 : vector<8x1xf32>
      %59 = arith.subf %52, %58 : vector<8x1xf32>
      %c0_35 = arith.constant 0 : index
      %c0_36 = arith.constant 0 : index
      %60 = vector.load %arg11[%c0_35, %c0_36] : memref<8x1xf32, #tpu.memory_space<vmem>>, vector<8x1xf32>
      tpu.vector_store %arg11[%c0_35, %c0_36], %59 {strides = array<i32>} : memref<8x1xf32, #tpu.memory_space<vmem>>, vector<8x1xf32>,
    } else {
    }
    %c1_i32_20 = arith.constant 1 : i32
    %40 = arith.cmpi eq, %arg0, %c1_i32_20 : i32
    %41 = arith.extui %40 : i1 to i32
    %c0_i32_21 = arith.constant 0 : i32
    %42 = arith.cmpi ne, %41, %c0_i32_21 : i32
    scf.if %42 {
      %c0_22 = arith.constant 0 : index
      %c0_23 = arith.constant 0 : index
      %43 = vector.load %arg10[%c0_22, %c0_23] : memref<8x1xf32, #tpu.memory_space<vmem>>, vector<8x1xf32>
      %44 = vector.broadcast %43 : vector<8x1xf32> to vector<8x128xf32>
      %45 = arith.mulf %32, %44 : vector<8x128xf32>
      %c0_24 = arith.constant 0 : index
      %c0_25 = arith.constant 0 : index
      %46 = vector.load %arg11[%c0_24, %c0_25] : memref<8x1xf32, #tpu.memory_space<vmem>>, vector<8x1xf32>
      %47 = vector.broadcast %46 : vector<8x1xf32> to vector<8x128xf32>
      %48 = arith.addf %45, %47 : vector<8x128xf32>
      %cst_26 = arith.constant 2.000000e-01 : f32
      %49 = vector.broadcast %cst_26 : f32 to vector<8x128xf32>
      %50 = arith.mulf %49, %48 : vector<8x128xf32>
      %51 = arith.maximumf %48, %50 : vector<8x128xf32>
      %c0_27 = arith.constant 0 : index
      %c0_28 = arith.constant 0 : index
      %52 = vector.load %arg7[%c0_27, %c0_28] : memref<8x128xf32, #tpu.memory_space<vmem>>, vector<8x128xf32>
      tpu.vector_store %arg7[%c0_27, %c0_28], %51 {strides = array<i32>} : memref<8x128xf32, #tpu.memory_space<vmem>>, vector<8x128xf32>,
    } else {
    }
    return
  }
  func.func @transform_0(%arg0: i32, %arg1: i32, %arg2: i32) -> (i32, i32, i32) {
    %c0_i32 = arith.constant 0 : i32
    %c0_i32_0 = arith.constant 0 : i32
    %c0_i32_1 = arith.constant 0 : i32
    return %arg1, %c0_i32, %c0_i32_0 : i32, i32, i32
  }
  func.func @transform_1(%arg0: i32, %arg1: i32, %arg2: i32) -> (i32, i32, i32) {
    %c0_i32 = arith.constant 0 : i32
    %c0_i32_0 = arith.constant 0 : i32
    %c0_i32_1 = arith.constant 0 : i32
    %c0_i32_2 = arith.constant 0 : i32
    return %c0_i32, %c0_i32_0, %c0_i32_1 : i32, i32, i32
  }
  func.func @transform_2(%arg0: i32, %arg1: i32, %arg2: i32) -> (i32, i32) {
    %c0_i32 = arith.constant 0 : i32
    %c0_i32_0 = arith.constant 0 : i32
    return %c0_i32, %arg2 : i32, i32
  }
  func.func @transform_3(%arg0: i32, %arg1: i32, %arg2: i32) -> (i32, i32) {
    %c0_i32 = arith.constant 0 : i32
    %c0_i32_0 = arith.constant 0 : i32
    %c0_i32_1 = arith.constant 0 : i32
    return %c0_i32, %c0_i32_0 : i32, i32
  }
  func.func @transform_4(%arg0: i32, %arg1: i32, %arg2: i32) -> (i32, i32) {
    %c1_i32 = arith.constant 1 : i32
    %0 = arith.muli %arg1, %c1_i32 : i32
    %1 = arith.addi %0, %arg2 : i32
    %2 = arith.muli %1, %arg0 : i32
    %c0_i32 = arith.constant 0 : i32
    %c0_i32_0 = arith.constant 0 : i32
    return %c0_i32, %2 : i32, i32
  }
}

</mosaic_0001>

<llo_original>
// kernel: conv_block.1
$region0: #{conv_block.1}
  #allocation0 [shape = 'u32[]', space=smem, size = 0x4, offset = 0x4, fixed_abs, tag = 'smem constant byte address 0x4 - core index']
  #allocation1 [shape = 'u32[144,128]{1,0:T(1,128)}', space=vmem, size = 0x12000, scoped, tag = 'internal scratch']
  #allocation2 [shape = 'f32[8,1]{1,0:T(8,128)}', space=vmem, size = 0x1000, scoped, tag = 'scratch operand']
  #allocation3 [shape = 'f32[8,1]{1,0:T(8,128)}', space=vmem, size = 0x1000, scoped, tag = 'scratch operand']
  #allocation4 [shape = 'f32[8,1]{1,0:T(8,128)}', space=vmem, size = 0x1000, scoped, tag = 'scratch operand']
  #allocation5 [shape = 'f32[8,1]{1,0:T(8,128)}', space=vmem, size = 0x1000, scoped, tag = 'scratch operand']
  %s0 = inlined_call_operand.vmem [shape: f32[2,16,256], index: 0, kind: input, shape index: {}]
  %s1 = inlined_call_operand.vmem [shape: f32[4,8,16], index: 1, kind: input, shape index: {}]
  %s2 = inlined_call_operand.vmem [shape: f32[1,128], index: 2, kind: input, shape index: {}]
  %s3 = inlined_call_operand.vmem [shape: f32[8,2], index: 3, kind: input, shape index: {}]
  %s4 = inlined_call_operand.vmem [shape: f32[8,256], index: 4, kind: output, shape index: {}]
  %s5 = sld [smem:[#allocation0]]
  $region65: #{conv_block.1} parent=0
    _
  %s7 = ssub.s32 1, %s5
  %s8 = scalar_select 0, %s7, %s5
  loop: start=0, step=1, limit=6
  $region2: #{conv_block.1} parent=0 // loop_pre_header
    _
  $region3: #{conv_block.1} parent=0 // loop_header
    %s10 = sphi 0, %s14
    %p11 = scmp.ge.s32.totalorder %s10, 6
    %s17 = sphi 0, %s36
    %s18 = sphi 0, %s32
    %s19 = sphi 0, %s28
    %s20 = sphi 0, %s17
    %s21 = sphi 0, %s18
    %s22 = sphi 0, %s19
    %s23 = sphi 0, %s20
    %s24 = sphi 0, %s21
    %s25 = sphi 0, %s22
    %s39 = sphi 0, %s41
    %s42 = sphi 0, %s39
    %s43 = sphi 0, %s42
    %s59 = sphi 0, %s43
    %s63 = sphi 0, %s63
    %s65 = sphi 0, %s63
    %s66 = sphi 0, %s65
    %s80 = sphi 0, %s66
    %s86 = sphi 0, %s88
    %s89 = sphi 0, %s86
    %s90 = sphi 0, %s89
    %s106 = sphi 0, %s90
    %s110 = sphi 0, %s110
    %s112 = sphi 0, %s110
    %s113 = sphi 0, %s112
    %s127 = sphi 0, %s113
    %s137 = sphi 0, %s139
    %s140 = sphi 0, %s137
    %s141 = sphi 0, %s140
    %s157 = sphi 0, %s141
  $region4: #{conv_block.1} parent=0 // loop_header_branch
    %13 = sbr.rel (%p11) target = $region8
  $region5: #{conv_block.1} parent=0 // loop_body
    %s15 = ssub.s32 %s10, 1
    %s16 = ssub.s32 %s10, 2
    %s26 = sadd.s32 1, %s19
    %p27 = scmp.ge.s32.totalorder %s26, 1
    %s28 = scalar_select %p27, 0, %s26
    %s29 = sadd.s32 1, %s18
    %s30 = scalar_select %p27, %s29, %s18
    %p31 = scmp.ge.s32.totalorder %s30, 2
    %s32 = scalar_select %p31, 0, %s30
    %s33 = sadd.s32 1, %s17
    %s34 = scalar_select %p31, %s33, %s17
    %p35 = scmp.ge.s32.totalorder %s34, 2
    %s36 = scalar_select %p35, 0, %s34
    %s37 = ssub.s32 %s18, %s32
    %p38 = scmp.eq.s32.totalorder %s37, 0
    %s40 = sadd.s32 %s39, 1
    %s41 = scalar_select %p38, %s39, %s40
    %p44 = pneg %p38
    %p45 = scmp.eq.s32.totalorder %s10, 3
    %p46 = por %p44, %p45
    %p47 = scmp.ne.s32.totalorder %s39, %s42
    %p48 = scmp.eq.s32.totalorder %s10, 0
    %p49 = por %p47, %p48
    %p50 = scmp.ne.s32.totalorder %s39, %s42
    %p51 = scmp.eq.s32.totalorder %s15, 3
    %p52 = por %p50, %p51
    %p53 = scmp.ne.s32.totalorder %s42, %s43
    %p54 = scmp.eq.s32.totalorder %s15, 0
    %p55 = por %p53, %p54
    %p56 = scmp.ne.s32.totalorder %s42, %s43
    %p57 = scmp.eq.s32.totalorder %s16, 3
    %p58 = por %p56, %p57
    %p60 = scmp.ne.s32.totalorder %s43, %s59
    %p61 = scmp.eq.s32.totalorder %s16, 0
    %p62 = por %p60, %p61
    %s64 = sadd.s32 %s63, 1
    %p67 = scmp.eq.s32.totalorder %s10, 3
    %p68 = scmp.ne.s32.totalorder %s63, %s65
    %p69 = scmp.eq.s32.totalorder %s10, 0
    %p70 = por %p68, %p69
    %p71 = scmp.ne.s32.totalorder %s63, %s65
    %p72 = scmp.eq.s32.totalorder %s15, 3
    %p73 = por %p71, %p72
    %p74 = scmp.ne.s32.totalorder %s65, %s66
    %p75 = scmp.eq.s32.totalorder %s15, 0
    %p76 = por %p74, %p75
    %p77 = scmp.ne.s32.totalorder %s65, %s66
    %p78 = scmp.eq.s32.totalorder %s16, 3
    %p79 = por %p77, %p78
    %p81 = scmp.ne.s32.totalorder %s66, %s80
    %p82 = scmp.eq.s32.totalorder %s16, 0
    %p83 = por %p81, %p82
    %s84 = ssub.s32 %s19, %s28
    %p85 = scmp.eq.s32.totalorder %s84, 0
    %s87 = sadd.s32 %s86, 1
    %s88 = scalar_select %p85, %s86, %s87
    %p91 = pneg %p85
    %p92 = scmp.eq.s32.totalorder %s10, 3
    %p93 = por %p91, %p92
    %p94 = scmp.ne.s32.totalorder %s86, %s89
    %p95 = scmp.eq.s32.totalorder %s10, 0
    %p96 = por %p94, %p95
    %p97 = scmp.ne.s32.totalorder %s86, %s89
    %p98 = scmp.eq.s32.totalorder %s15, 3
    %p99 = por %p97, %p98
    %p100 = scmp.ne.s32.totalorder %s89, %s90
    %p101 = scmp.eq.s32.totalorder %s15, 0
    %p102 = por %p100, %p101
    %p103 = scmp.ne.s32.totalorder %s89, %s90
    %p104 = scmp.eq.s32.totalorder %s16, 3
    %p105 = por %p103, %p104
    %p107 = scmp.ne.s32.totalorder %s90, %s106
    %p108 = scmp.eq.s32.totalorder %s16, 0
    %p109 = por %p107, %p108
    %s111 = sadd.s32 %s110, 1
    %p114 = scmp.eq.s32.totalorder %s10, 3
    %p115 = scmp.ne.s32.totalorder %s110, %s112
    %p116 = scmp.eq.s32.totalorder %s10, 0
    %p117 = por %p115, %p116
    %p118 = scmp.ne.s32.totalorder %s110, %s112
    %p119 = scmp.eq.s32.totalorder %s15, 3
    %p120 = por %p118, %p119
    %p121 = scmp.ne.s32.totalorder %s112, %s113
    %p122 = scmp.eq.s32.totalorder %s15, 0
    %p123 = por %p121, %p122
    %p124 = scmp.ne.s32.totalorder %s112, %s113
    %p125 = scmp.eq.s32.totalorder %s16, 3
    %p126 = por %p124, %p125
    %p128 = scmp.ne.s32.totalorder %s113, %s127
    %p129 = scmp.eq.s32.totalorder %s16, 0
    %p130 = por %p128, %p129
    %s131 = sadd.s32 %s18, %s19
    %s132 = smul.u32 %s131, %s17
    %s133 = sadd.s32 %s32, %s28
    %s134 = smul.u32 %s133, %s36
    %s135 = ssub.s32 %s132, %s134
    %p136 = scmp.eq.s32.totalorder %s135, 0
    %s138 = sadd.s32 %s137, 1
    %s139 = scalar_select %p136, %s137, %s138
    %p142 = pneg %p136
    %p143 = scmp.eq.s32.totalorder %s10, 3
    %p144 = por %p142, %p143
    %p145 = scmp.ne.s32.totalorder %s137, %s140
    %p146 = scmp.eq.s32.totalorder %s10, 0
    %p147 = por %p145, %p146
    %p148 = scmp.ne.s32.totalorder %s137, %s140
    %p149 = scmp.eq.s32.totalorder %s15, 3
    %p150 = por %p148, %p149
    %p151 = scmp.ne.s32.totalorder %s140, %s141
    %p152 = scmp.eq.s32.totalorder %s15, 0
    %p153 = por %p151, %p152
    %p154 = scmp.ne.s32.totalorder %s140, %s141
    %p155 = scmp.eq.s32.totalorder %s16, 3
    %p156 = por %p154, %p155
    %p158 = scmp.ne.s32.totalorder %s141, %s157
    %p159 = scmp.eq.s32.totalorder %s16, 0
    %p160 = por %p158, %p159
    %p161 = scmp.le.s32.totalorder 1, %s10
    %p162 = scmp.lt.s32.totalorder %s10, 5
    %p163 = pnand %p161, %p162
    %p164 = pneg %p163
    // Predicated region
    $region9: #{conv_block.1} parent=5 // pred_check
      _
    $region10: #{conv_block.1} parent=5 // pred_check_branch
      %166 = sbr.rel (%p163) target = $region12
    $region11: #{conv_block.1} parent=5 // pred_region
      %s167 = ssub.s32 %s10, 1
      // Predicated region
      $region13: #{conv_block.1} parent=11 // pred_check
        %p168 = pneg %p76
      $region14: #{conv_block.1} parent=11 // pred_check_branch
        %170 = sbr.rel (%p168) target = $region16
      $region15: #{conv_block.1} parent=11 // pred_region
        _
      $region16: #{conv_block.1} parent=11 // pred_fallthru
        _
      // Predicated region
      $region17: #{conv_block.1} parent=11 // pred_check
        %p171 = pneg %p102
      $region18: #{conv_block.1} parent=11 // pred_check_branch
        %173 = sbr.rel (%p171) target = $region20
      $region19: #{conv_block.1} parent=11 // pred_region
        %p174 = scmp.lt.s32.totalorder %s22, 0
        %s175 = scalar_select %p174, %s22, 0
        %s176 = scalar_lea.vmem %s2, %s175
      $region20: #{conv_block.1} parent=11 // pred_fallthru
        _
      // Predicated region
      $region21: #{conv_block.1} parent=11 // pred_check
        %p177 = pneg %p123
      $region22: #{conv_block.1} parent=11 // pred_check_branch
        %179 = sbr.rel (%p177) target = $region24
      $region23: #{conv_block.1} parent=11 // pred_region
        _
      $region24: #{conv_block.1} parent=11 // pred_fallthru
        _
    $region12: #{conv_block.1} parent=5 // pred_fallthru
      _
    %p180 = scmp.lt.s32.totalorder %s10, 4
    // Predicated region
    $region25: #{conv_block.1} parent=5 // pred_check
      %p181 = pneg %p180
    $region26: #{conv_block.1} parent=5 // pred_check_branch
      %183 = sbr.rel (%p181) target = $region28
    $region27: #{conv_block.1} parent=5 // pred_region
      // Predicated region
      $region29: #{conv_block.1} parent=27 // pred_check
        %p184 = pneg %p49
      $region30: #{conv_block.1} parent=27 // pred_check_branch
        %186 = sbr.rel (%p184) target = $region32
      $region31: #{conv_block.1} parent=27 // pred_region
        %p187 = scmp.lt.s32.totalorder %s18, 1
        %s188 = scalar_select %p187, %s18, 1
        %s189 = smul.addr %s188, 4
        %s190 = smul.addr %s189, 8
        %s191 = scalar_lea.vmem %s0, %s190
      $region32: #{conv_block.1} parent=27 // pred_fallthru
        _
    $region28: #{conv_block.1} parent=5 // pred_fallthru
      _
    %p192 = scmp.le.s32.totalorder 1, %s10
    %p193 = scmp.lt.s32.totalorder %s10, 5
    %p194 = pnand %p192, %p193
    %p195 = pneg %p194
    // Predicated region
    $region33: #{conv_block.1} parent=5 // pred_check
      _
    $region34: #{conv_block.1} parent=5 // pred_check_branch
      %197 = sbr.rel (%p194) target = $region36
    $region35: #{conv_block.1} parent=5 // pred_region
      %s198 = ssub.s32 %s10, 1
      %p199 = scmp.lt.s32.totalorder %s21, 1
      %s200 = scalar_select %p199, %s21, 1
      %s201 = smul.addr %s200, 4
      %s202 = smul.addr %s201, 8
      %s203 = scalar_lea.vmem %s0, %s202
      %p204 = pneg %p55
      %p205 = pneg %p52
      %p206 = pneg %p76
      %p207 = pneg %p73
      %p208 = scmp.lt.s32.totalorder %s22, 0
      %s209 = scalar_select %p208, %s22, 0
      %s210 = scalar_lea.vmem %s2, %s209
      %p211 = pneg %p102
      %p212 = pneg %p99
      %p213 = pneg %p123
      %p214 = pneg %p120
      %p215 = pneg %p153
      %p216 = pneg %p150
      %s217 = sadd.s32 %s21, %s22
      %s218 = smul.u32 %s217, %s20
      %p219 = scmp.lt.s32.totalorder %s218, 1
      %s220 = scalar_select %p219, %s218, 1
      %s221 = smul.addr %s220, 8
      %s222 = scalar_lea.vmem %s4, %s221
      %p223 = scmp.lt.s32.totalorder %s21, 1
      %s224 = scalar_select %p223, %s21, 1
      %s225 = smul.addr %s224, 4
      %s226 = smul.addr %s225, 8
      %s227 = scalar_lea.vmem %s0, %s226
      %p228 = scmp.lt.s32.totalorder %s22, 0
      %s229 = scalar_select %p228, %s22, 0
      %s230 = scalar_lea.vmem %s2, %s229
      %s231 = sadd.s32 %s21, %s22
      %s232 = smul.u32 %s231, %s20
      %p233 = scmp.lt.s32.totalorder %s232, 1
      %s234 = scalar_select %p233, %s232, 1
      %s235 = smul.addr %s234, 8
      %s236 = scalar_lea.vmem %s4, %s235
      %s237 = sadd.s32 %s21, %s22
      %s238 = smul.u32 %s237, %s20
      %p239 = scmp.eq.s32.totalorder %s21, 0
      %p240 = scmp.eq.s32.totalorder %s22, 0
      %p241 = pnand %p239, %p240
      %p242 = pneg %p241
      %p243 = scmp.eq.s32.totalorder %s20, 0
      %p244 = pnand %p243, %p242
      %p245 = pneg %p244
      // Predicated region
      $region37: #{conv_block.1} parent=35 // pred_check
        _
      $region38: #{conv_block.1} parent=35 // pred_check_branch
        %247 = sbr.rel (%p244) target = $region40
      $region39: #{conv_block.1} parent=35 // pred_region
        %vm248 = vcmask 7168
        %249 = vst.msk [vmem:[#allocation2] sm:$0xff] %vm248, 0.0
        %250 = vst.msk [vmem:[#allocation3] sm:$0xff] %vm248, 0.0
      $region40: #{conv_block.1} parent=35 // pred_fallthru
        _
      %s251 = smul.u32 %s22, 128
      %s252 = sshra.s32 %s251, 7
      %s253 = sand.u32 %s251, 127
      %s254 = smul.addr %s252, 8
      %s255 = scalar_lea.vmem %s227, %s254
      %v256 = vld [vmem:[%s255] sm:$0xff]
      %v257 = vld [vmem:[%s255 + $0x8] sm:$0xff]
      %v258 = vld [vmem:[%s255 + $0x10] sm:$0xff]
      %v259 = vld [vmem:[%s255 + $0x18] sm:$0xff]
      %v260 = vld [vmem:[%s1] sm:$0xff]
      %s261 = scalar_lea.vmem %s1, 8
      %v262 = vld [vmem:[%s261] sm:$0xff]
      %267 = vrot.lane.b32.xlu0 %v256, 127
      %v268 = vpop.permute.xlu0 %267
      %269 = vrot.lane.b32.xlu0 %v257, 127
      %v270 = vpop.permute.xlu0 %269
      %271 = vrot.lane.b32.xlu0 %v258, 127
      %v272 = vpop.permute.xlu0 %271
      %273 = vrot.lane.b32.xlu0 %v259, 127
      %v274 = vpop.permute.xlu0 %273
      %vm275 = vcmask 1039360
      %v276 = vsel %vm275, %v268, %v270
      %v277 = vsel %vm275, %v272, %v274
      %vm280 = vcmask 130048
      %v282 = vsel %vm280, %v262, 0
      %284 = vmatprep.subr.mxu0 0.0
      %285 = vmatpush1.msra.mxu0 %v276
      %286 = vmatprep.subr.mxu0 0.0
      %287 = vmatpush1.msra.mxu0 %v277
      %288 = vmatprep.subr.mxu0 0.0
      %289 = vmatpush1.msra.mxu0 0.0
      %290 = vmatprep.subr.mxu0 0.0
      %291 = vmatpush1.msra.mxu0 0.0
      %292 = vmatprep.subr.mxu0 0.0
      %293 = vmatpush1.msra.mxu0 0.0
      %294 = vmatprep.subr.mxu0 0.0
      %295 = vmatpush1.msra.mxu0 0.0
      %296 = vmatprep.subr.mxu0 0.0
      %297 = vmatpush1.msra.mxu0 0.0
      %298 = vmatprep.subr.mxu0 0.0
      %299 = vmatpush1.msra.mxu0 0.0
      %300 = vmatprep.subr.mxu0 0.0
      %301 = vmatpush1.msra.mxu0 0.0
      %302 = vmatprep.subr.mxu0 0.0
      %303 = vmatpush1.msra.mxu0 0.0
      %304 = vmatprep.subr.mxu0 0.0
      %305 = vmatpush1.msra.mxu0 0.0
      %306 = vmatprep.subr.mxu0 0.0
      %307 = vmatpush1.msra.mxu0 0.0
      %308 = vmatprep.subr.mxu0 0.0
      %309 = vmatpush1.msra.mxu0 0.0
      %310 = vmatprep.subr.mxu0 0.0
      %311 = vmatpush1.msra.mxu0 0.0
      %312 = vmatprep.subr.mxu0 0.0
      %313 = vmatpush1.msra.mxu0 0.0
      %314 = vmatprep.subr.mxu0 0.0
      %315 = vmatpush1.msra.mxu0 0.0
      %316 = vmatprep.subr.mxu0 0.0
      %317 = vmatpush1.msra.mxu0 0.0
      %318 = vmatprep.subr.mxu0 0.0
      %319 = vmatpush1.msra.mxu0 0.0
      %320 = vmatprep.subr.mxu0 0.0
      %321 = vmatpush1.msra.mxu0 0.0
      %322 = vmatprep.subr.mxu0 0.0
      %323 = vmatpush1.msra.mxu0 0.0
      %324 = vmatprep.subr.mxu0 0.0
      %325 = vmatpush1.msra.mxu0 0.0
      %326 = vmatprep.subr.mxu0 0.0
      %327 = vmatpush1.msra.mxu0 0.0
      %328 = vmatprep.subr.mxu0 0.0
      %329 = vmatpush1.msra.mxu0 0.0
      %330 = vmatprep.subr.mxu0 0.0
      %331 = vmatpush1.msra.mxu0 0.0
      %332 = vmatprep.subr.mxu0 0.0
      %333 = vmatpush1.msra.mxu0 0.0
      %334 = vmatprep.subr.mxu0 0.0
      %335 = vmatpush1.msra.mxu0 0.0
      %336 = vmatprep.subr.mxu0 0.0
      %337 = vmatpush1.msra.mxu0 0.0
      %338 = vmatprep.subr.mxu0 0.0
      %339 = vmatpush1.msra.mxu0 0.0
      %340 = vmatprep.subr.mxu0 0.0
      %341 = vmatpush1.msra.mxu0 0.0
      %342 = vmatprep.subr.mxu0 0.0
      %343 = vmatpush1.msra.mxu0 0.0
      %344 = vmatprep.subr.mxu0 0.0
      %345 = vmatpush1.msra.mxu0 0.0
      %346 = vmatprep.subr.mxu0 0.0
      %347 = vmatpush1.msra.mxu0 0.0
      %348 = vmatprep.mubr.f32.mxu0 0.0
      %349 = vmatmul.mubr.f32.gmra.mrb[0].mxu0 %v282
      %v350 = vpop.f32.mrb[0].mxu0
      %v351 = vadd.f32 0.0, %v350
      %v352 = vpop.f32.mrb[0].mxu0
      %353 = vdwg.mxu0
      %v355 = vsel %vm280, %v260, 0
      %357 = vmatprep.subr.mxu0 0.0
      %358 = vmatpush1.msra.mxu0 %v256
      %359 = vmatprep.subr.mxu0 0.0
      %360 = vmatpush1.msra.mxu0 %v258
      %361 = vmatprep.subr.mxu0 0.0
      %362 = vmatpush1.msra.mxu0 0.0
      %363 = vmatprep.subr.mxu0 0.0
      %364 = vmatpush1.msra.mxu0 0.0
      %365 = vmatprep.subr.mxu0 0.0
      %366 = vmatpush1.msra.mxu0 0.0
      %367 = vmatprep.subr.mxu0 0.0
      %368 = vmatpush1.msra.mxu0 0.0
      %369 = vmatprep.subr.mxu0 0.0
      %370 = vmatpush1.msra.mxu0 0.0
      %371 = vmatprep.subr.mxu0 0.0
      %372 = vmatpush1.msra.mxu0 0.0
      %373 = vmatprep.subr.mxu0 0.0
      %374 = vmatpush1.msra.mxu0 0.0
      %375 = vmatprep.subr.mxu0 0.0
      %376 = vmatpush1.msra.mxu0 0.0
      %377 = vmatprep.subr.mxu0 0.0
      %378 = vmatpush1.msra.mxu0 0.0
      %379 = vmatprep.subr.mxu0 0.0
      %380 = vmatpush1.msra.mxu0 0.0
      %381 = vmatprep.subr.mxu0 0.0
      %382 = vmatpush1.msra.mxu0 0.0
      %383 = vmatprep.subr.mxu0 0.0
      %384 = vmatpush1.msra.mxu0 0.0
      %385 = vmatprep.subr.mxu0 0.0
      %386 = vmatpush1.msra.mxu0 0.0
      %387 = vmatprep.subr.mxu0 0.0
      %388 = vmatpush1.msra.mxu0 0.0
      %389 = vmatprep.subr.mxu0 0.0
      %390 = vmatpush1.msra.mxu0 0.0
      %391 = vmatprep.subr.mxu0 0.0
      %392 = vmatpush1.msra.mxu0 0.0
      %393 = vmatprep.subr.mxu0 0.0
      %394 = vmatpush1.msra.mxu0 0.0
      %395 = vmatprep.subr.mxu0 0.0
      %396 = vmatpush1.msra.mxu0 0.0
      %397 = vmatprep.subr.mxu0 0.0
      %398 = vmatpush1.msra.mxu0 0.0
      %399 = vmatprep.subr.mxu0 0.0
      %400 = vmatpush1.msra.mxu0 0.0
      %401 = vmatprep.subr.mxu0 0.0
      %402 = vmatpush1.msra.mxu0 0.0
      %403 = vmatprep.subr.mxu0 0.0
      %404 = vmatpush1.msra.mxu0 0.0
      %405 = vmatprep.subr.mxu0 0.0
      %406 = vmatpush1.msra.mxu0 0.0
      %407 = vmatprep.subr.mxu0 0.0
      %408 = vmatpush1.msra.mxu0 0.0
      %409 = vmatprep.subr.mxu0 0.0
      %410 = vmatpush1.msra.mxu0 0.0
      %411 = vmatprep.subr.mxu0 0.0
      %412 = vmatpush1.msra.mxu0 0.0
      %413 = vmatprep.subr.mxu0 0.0
      %414 = vmatpush1.msra.mxu0 0.0
      %415 = vmatprep.subr.mxu0 0.0
      %416 = vmatpush1.msra.mxu0 0.0
      %417 = vmatprep.subr.mxu0 0.0
      %418 = vmatpush1.msra.mxu0 0.0
      %419 = vmatprep.subr.mxu0 0.0
      %420 = vmatpush1.msra.mxu0 0.0
      %421 = vmatprep.mubr.f32.mxu0 0.0
      %422 = vmatmul.mubr.f32.gmra.mrb[0].mxu0 %v355
      %v423 = vpop.f32.mrb[0].mxu0
      %v424 = vadd.f32 %v351, %v423
      %v425 = vpop.f32.mrb[0].mxu0
      %426 = vdwg.mxu0
      %s427 = scalar_lea.vmem %s1, 16
      %v428 = vld [vmem:[%s427] sm:$0xff]
      %429 = vrot.lane.b32.xlu0 %v256, 119
      %v430 = vpop.permute.xlu0 %429
      %431 = vrot.lane.b32.xlu0 %v257, 119
      %v432 = vpop.permute.xlu0 %431
      %433 = vrot.lane.b32.xlu0 %v258, 119
      %v434 = vpop.permute.xlu0 %433
      %435 = vrot.lane.b32.xlu0 %v259, 119
      %v436 = vpop.permute.xlu0 %435
      %vm437 = vcmask 973824
      %v438 = vsel %vm437, %v430, %v432
      %v439 = vsel %vm437, %v434, %v436
      %v443 = vsel %vm280, %v428, 0
      %445 = vmatprep.subr.mxu0 0.0
      %446 = vmatpush1.msra.mxu0 %v438
      %447 = vmatprep.subr.mxu0 0.0
      %448 = vmatpush1.msra.mxu0 %v439
      %449 = vmatprep.subr.mxu0 0.0
      %450 = vmatpush1.msra.mxu0 0.0
      %451 = vmatprep.subr.mxu0 0.0
      %452 = vmatpush1.msra.mxu0 0.0
      %453 = vmatprep.subr.mxu0 0.0
      %454 = vmatpush1.msra.mxu0 0.0
      %455 = vmatprep.subr.mxu0 0.0
      %456 = vmatpush1.msra.mxu0 0.0
      %457 = vmatprep.subr.mxu0 0.0
      %458 = vmatpush1.msra.mxu0 0.0
      %459 = vmatprep.subr.mxu0 0.0
      %460 = vmatpush1.msra.mxu0 0.0
      %461 = vmatprep.subr.mxu0 0.0
      %462 = vmatpush1.msra.mxu0 0.0
      %463 = vmatprep.subr.mxu0 0.0
      %464 = vmatpush1.msra.mxu0 0.0
      %465 = vmatprep.subr.mxu0 0.0
      %466 = vmatpush1.msra.mxu0 0.0
      %467 = vmatprep.subr.mxu0 0.0
      %468 = vmatpush1.msra.mxu0 0.0
      %469 = vmatprep.subr.mxu0 0.0
      %470 = vmatpush1.msra.mxu0 0.0
      %471 = vmatprep.subr.mxu0 0.0
      %472 = vmatpush1.msra.mxu0 0.0
      %473 = vmatprep.subr.mxu0 0.0
      %474 = vmatpush1.msra.mxu0 0.0
      %475 = vmatprep.subr.mxu0 0.0
      %476 = vmatpush1.msra.mxu0 0.0
      %477 = vmatprep.subr.mxu0 0.0
      %478 = vmatpush1.msra.mxu0 0.0
      %479 = vmatprep.subr.mxu0 0.0
      %480 = vmatpush1.msra.mxu0 0.0
      %481 = vmatprep.subr.mxu0 0.0
      %482 = vmatpush1.msra.mxu0 0.0
      %483 = vmatprep.subr.mxu0 0.0
      %484 = vmatpush1.msra.mxu0 0.0
      %485 = vmatprep.subr.mxu0 0.0
      %486 = vmatpush1.msra.mxu0 0.0
      %487 = vmatprep.subr.mxu0 0.0
      %488 = vmatpush1.msra.mxu0 0.0
      %489 = vmatprep.subr.mxu0 0.0
      %490 = vmatpush1.msra.mxu0 0.0
      %491 = vmatprep.subr.mxu0 0.0
      %492 = vmatpush1.msra.mxu0 0.0
      %493 = vmatprep.subr.mxu0 0.0
      %494 = vmatpush1.msra.mxu0 0.0
      %495 = vmatprep.subr.mxu0 0.0
      %496 = vmatpush1.msra.mxu0 0.0
      %497 = vmatprep.subr.mxu0 0.0
      %498 = vmatpush1.msra.mxu0 0.0
      %499 = vmatprep.subr.mxu0 0.0
      %500 = vmatpush1.msra.mxu0 0.0
      %501 = vmatprep.subr.mxu0 0.0
      %502 = vmatpush1.msra.mxu0 0.0
      %503 = vmatprep.subr.mxu0 0.0
      %504 = vmatpush1.msra.mxu0 0.0
      %505 = vmatprep.subr.mxu0 0.0
      %506 = vmatpush1.msra.mxu0 0.0
      %507 = vmatprep.subr.mxu0 0.0
      %508 = vmatpush1.msra.mxu0 0.0
      %509 = vmatprep.mubr.f32.mxu0 0.0
      %510 = vmatmul.mubr.f32.gmra.mrb[0].mxu0 %v443
      %v511 = vpop.f32.mrb[0].mxu0
      %v512 = vadd.f32 0.0, %v511
      %v513 = vpop.f32.mrb[0].mxu0
      %514 = vdwg.mxu0
      %v515 = vadd.f32 %v424, %v512
      %s516 = scalar_lea.vmem %s1, 24
      %v517 = vld [vmem:[%s516] sm:$0xff]
      %518 = vrot.lane.b32.xlu0 %v256, 118
      %v519 = vpop.permute.xlu0 %518
      %520 = vrot.lane.b32.xlu0 %v257, 118
      %v521 = vpop.permute.xlu0 %520
      %522 = vrot.lane.b32.xlu0 %v258, 118
      %v523 = vpop.permute.xlu0 %522
      %524 = vrot.lane.b32.xlu0 %v259, 118
      %v525 = vpop.permute.xlu0 %524
      %vm526 = vcmask 965632
      %v527 = vsel %vm526, %v519, %v521
      %v528 = vsel %vm526, %v523, %v525
      %v532 = vsel %vm280, %v517, 0
      %534 = vmatprep.subr.mxu0 0.0
      %535 = vmatpush1.msra.mxu0 %v527
      %536 = vmatprep.subr.mxu0 0.0
      %537 = vmatpush1.msra.mxu0 %v528
      %538 = vmatprep.subr.mxu0 0.0
      %539 = vmatpush1.msra.mxu0 0.0
      %540 = vmatprep.subr.mxu0 0.0
      %541 = vmatpush1.msra.mxu0 0.0
      %542 = vmatprep.subr.mxu0 0.0
      %543 = vmatpush1.msra.mxu0 0.0
      %544 = vmatprep.subr.mxu0 0.0
      %545 = vmatpush1.msra.mxu0 0.0
      %546 = vmatprep.subr.mxu0 0.0
      %547 = vmatpush1.msra.mxu0 0.0
      %548 = vmatprep.subr.mxu0 0.0
      %549 = vmatpush1.msra.mxu0 0.0
      %550 = vmatprep.subr.mxu0 0.0
      %551 = vmatpush1.msra.mxu0 0.0
      %552 = vmatprep.subr.mxu0 0.0
      %553 = vmatpush1.msra.mxu0 0.0
      %554 = vmatprep.subr.mxu0 0.0
      %555 = vmatpush1.msra.mxu0 0.0
      %556 = vmatprep.subr.mxu0 0.0
      %557 = vmatpush1.msra.mxu0 0.0
      %558 = vmatprep.subr.mxu0 0.0
      %559 = vmatpush1.msra.mxu0 0.0
      %560 = vmatprep.subr.mxu0 0.0
      %561 = vmatpush1.msra.mxu0 0.0
      %562 = vmatprep.subr.mxu0 0.0
      %563 = vmatpush1.msra.mxu0 0.0
      %564 = vmatprep.subr.mxu0 0.0
      %565 = vmatpush1.msra.mxu0 0.0
      %566 = vmatprep.subr.mxu0 0.0
      %567 = vmatpush1.msra.mxu0 0.0
      %568 = vmatprep.subr.mxu0 0.0
      %569 = vmatpush1.msra.mxu0 0.0
      %570 = vmatprep.subr.mxu0 0.0
      %571 = vmatpush1.msra.mxu0 0.0
      %572 = vmatprep.subr.mxu0 0.0
      %573 = vmatpush1.msra.mxu0 0.0
      %574 = vmatprep.subr.mxu0 0.0
      %575 = vmatpush1.msra.mxu0 0.0
      %576 = vmatprep.subr.mxu0 0.0
      %577 = vmatpush1.msra.mxu0 0.0
      %578 = vmatprep.subr.mxu0 0.0
      %579 = vmatpush1.msra.mxu0 0.0
      %580 = vmatprep.subr.mxu0 0.0
      %581 = vmatpush1.msra.mxu0 0.0
      %582 = vmatprep.subr.mxu0 0.0
      %583 = vmatpush1.msra.mxu0 0.0
      %584 = vmatprep.subr.mxu0 0.0
      %585 = vmatpush1.msra.mxu0 0.0
      %586 = vmatprep.subr.mxu0 0.0
      %587 = vmatpush1.msra.mxu0 0.0
      %588 = vmatprep.subr.mxu0 0.0
      %589 = vmatpush1.msra.mxu0 0.0
      %590 = vmatprep.subr.mxu0 0.0
      %591 = vmatpush1.msra.mxu0 0.0
      %592 = vmatprep.subr.mxu0 0.0
      %593 = vmatpush1.msra.mxu0 0.0
      %594 = vmatprep.subr.mxu0 0.0
      %595 = vmatpush1.msra.mxu0 0.0
      %596 = vmatprep.subr.mxu0 0.0
      %597 = vmatpush1.msra.mxu0 0.0
      %598 = vmatprep.mubr.f32.mxu0 0.0
      %599 = vmatmul.mubr.f32.gmra.mrb[0].mxu0 %v532
      %v600 = vpop.f32.mrb[0].mxu0
      %v601 = vadd.f32 0.0, %v600
      %v602 = vpop.f32.mrb[0].mxu0
      %603 = vdwg.mxu0
      %v604 = vadd.f32 %v515, %v601
      // Predicated region
      $region41: #{conv_block.1} parent=35 // pred_check
        %p605 = pneg %p243
      $region42: #{conv_block.1} parent=35 // pred_check_branch
        %607 = sbr.rel (%p605) target = $region44
      $region43: #{conv_block.1} parent=35 // pred_region
        %v608 = vld [vmem:[%s230] sm:$0x1]
        %v610 = vlaneseq
        %v611 = vshrl.u32 %v610, 7
        %v612 = vsub.s32 0, %v611
        %v613 = vrot.slane %v608, %v612
        %v615 = vmul.f32 %v604, %v613
        %v616 = vld [vmem:[#allocation2] sm:$0xff]
        %617 = vadd.xlane.f32.xlu0 %v615
        %v618 = vpop.xlane.xlu0 %617
        %v619 = vadd.f32 %v616, %v618
        %vm620 = vcmask 7168
        %621 = vst.msk [vmem:[#allocation2] sm:$0xff] %vm620, %v619
        %v622 = vld [vmem:[#allocation3] sm:$0xff]
        %v623 = vmul.f32 %v615, %v615
        %624 = vadd.xlane.f32.xlu0 %v623
        %v625 = vpop.xlane.xlu0 %624
        %v626 = vadd.f32 %v622, %v625
        %627 = vst.msk [vmem:[#allocation3] sm:$0xff] %vm620, %v626
      $region44: #{conv_block.1} parent=35 // pred_fallthru
        _
      %p628 = scmp.eq.s32.totalorder %s20, 1
      %p629 = pnand %p628, %p242
      %p630 = pneg %p629
      // Predicated region
      $region45: #{conv_block.1} parent=35 // pred_check
        _
      $region46: #{conv_block.1} parent=35 // pred_check_branch
        %632 = sbr.rel (%p629) target = $region48
      $region47: #{conv_block.1} parent=35 // pred_region
        %v633 = vld [vmem:[#allocation2] sm:$0xff]
        %v634 = vmul.f32 %v633, 0.0078125
        %v635 = vld [vmem:[#allocation3] sm:$0xff]
        %v636 = vmul.f32 %v635, 0.0078125
        %v637 = vmul.f32 %v634, %v634
        %v638 = vsub.f32 %v636, %v637
        %v639 = vld [vmem:[%s3] sm:$0xff]
        %v640 = vadd.f32 %v638, 1e-05
        %v641 = vrsqrt.pop %v640
        %v642 = vmul.f32 %v639, %v641
        %vm643 = vcmask 7168
        %644 = vst.msk [vmem:[#allocation4] sm:$0xff] %vm643, %v642
        %v645 = vmul.f32 %v634, %v642
        %647 = vrot.lane.b32.xlu0 %v645, 1
        %v648 = vpop.permute.xlu0 %647
        %v650 = vsub.f32 %v639, %v648
        %652 = vrot.lane.b32.xlu0 %v650, 127
        %v653 = vpop.permute.xlu0 %652
        %655 = vst.msk [vmem:[#allocation5] sm:$0xff] %vm643, %v653
      $region48: #{conv_block.1} parent=35 // pred_fallthru
        _
      // Predicated region
      $region49: #{conv_block.1} parent=35 // pred_check
        %p656 = pneg %p628
      $region50: #{conv_block.1} parent=35 // pred_check_branch
        %658 = sbr.rel (%p656) target = $region52
      $region51: #{conv_block.1} parent=35 // pred_region
        %v659 = vld [vmem:[#allocation4] sm:$0xff]
        %661 = vset.pattern.permute.xlu0 0
        %662 = vperm.xlu0 %661, %v659
        %v663 = vpop.permute.xlu0 %662
        %v665 = vmul.f32 %v604, %v663
        %v666 = vld [vmem:[#allocation5] sm:$0xff]
        %668 = vset.pattern.permute.xlu0 0
        %669 = vperm.xlu0 %668, %v666
        %v670 = vpop.permute.xlu0 %669
        %v672 = vadd.f32 %v665, %v670
        %v673 = vmul.f32 %v672, 0.2
        %v674 = vmax.f32 %v672, %v673
        %675 = vst [vmem:[%s236] sm:$0xff] %v674
      $region52: #{conv_block.1} parent=35 // pred_fallthru
        _
      %s676 = sadd.s32 %s21, %s22
      %s677 = smul.u32 %s676, %s20
      %p678 = scmp.lt.s32.totalorder %s677, 1
      %s679 = scalar_select %p678, %s677, 1
      %s680 = smul.addr %s679, 8
      %s681 = scalar_lea.vmem %s4, %s680
      // Predicated region
      $region53: #{conv_block.1} parent=35 // pred_check
        %p682 = pneg %p150
      $region54: #{conv_block.1} parent=35 // pred_check_branch
        %684 = sbr.rel (%p682) target = $region56
      $region55: #{conv_block.1} parent=35 // pred_region
        %s685 = sadd.s32 %s21, %s22
        %s686 = smul.u32 %s685, %s20
      $region56: #{conv_block.1} parent=35 // pred_fallthru
        _
    $region36: #{conv_block.1} parent=5 // pred_fallthru
      _
    %p687 = scmp.le.s32.totalorder 2, %s10
    // Predicated region
    $region57: #{conv_block.1} parent=5 // pred_check
      %p688 = pneg %p687
    $region58: #{conv_block.1} parent=5 // pred_check_branch
      %690 = sbr.rel (%p688) target = $region60
    $region59: #{conv_block.1} parent=5 // pred_region
      %s691 = ssub.s32 %s10, 2
      // Predicated region
      $region61: #{conv_block.1} parent=59 // pred_check
        %p692 = pneg %p156
      $region62: #{conv_block.1} parent=59 // pred_check_branch
        %694 = sbr.rel (%p692) target = $region64
      $region63: #{conv_block.1} parent=59 // pred_region
        %s695 = sadd.s32 %s24, %s25
        %s696 = smul.u32 %s695, %s23
        %p697 = scmp.lt.s32.totalorder %s696, 1
        %s698 = scalar_select %p697, %s696, 1
        %s699 = smul.addr %s698, 8
        %s700 = scalar_lea.vmem %s4, %s699
      $region64: #{conv_block.1} parent=59 // pred_fallthru
        _
    $region60: #{conv_block.1} parent=5 // pred_fallthru
      _
  $region6: #{conv_block.1} parent=0 // loop_footer
    %s14 = sadd.s32 1, %s10
  $region7: #{conv_block.1} parent=0 // loop_footer_branch
    %9 = sbr.rel target = $region3
  $region8: #{conv_block.1} parent=0 // loop_exit
    _

</llo_original>
